<compile_context>
chip_gen: v5e
topology: v5e:2x2
jax: 0.10.0
libtpu: 0.0.40
codegen_flags: <defaults>
</compile_context>

<pallas_src>
import functools

import jax
import jax.numpy as jnp
from jax.experimental import pallas as pl
from jax.experimental.pallas import tpu as pltpu

IN_DIM = 3 * 32 * 32   # 3072
H1 = 32
H2 = 64
OUT_DIM = 10
LANE = 128             # lane width, used only for VMEM-footprint accounting


def _round_up(n, m):
    return ((n + m - 1) // m) * m


def mlp2_kernel(x_ref, w1_ref, b1_ref, w2_ref, w3_ref, b3_ref, o_ref, *, activation):
    # Three MXU matmuls + elementwise activations, all resident in VMEM.
    x = x_ref[...]                                                          # (TB, 3072)
    h = jnp.dot(x, w1_ref[...], preferred_element_type=jnp.float32) + b1_ref[...]
    if activation == "sigmoid":
        # exp on EUP, approx reciprocal on EUP -> divide stays off the VALU slot.
        h = pl.reciprocal(1.0 + jnp.exp(-h), approx=True)
    else:
        h = jnp.maximum(h, 0.0)
    h = jnp.dot(h, w2_ref[...], preferred_element_type=jnp.float32)         # fc2: no bias
    if activation == "sigmoid":
        h = pl.reciprocal(1.0 + jnp.exp(-h), approx=True)
    else:
        h = jnp.maximum(h, 0.0)
    out = jnp.dot(h, w3_ref[...], preferred_element_type=jnp.float32) + b3_ref[...]
    o_ref[...] = out.astype(o_ref.dtype)                                    # (TB, 10)


def _select_batch_tile(B, max_tile):
    """Batch tile: minimal padding for small B, large MXU-friendly tiles for big B."""
    if B <= max_tile:
        return _round_up(B, 8)                      # sublane rule only needs %8 == 0
    candidates = [c for c in (1024, 512, 384, 256, 128) if c <= max_tile]
    for c in candidates:                            # largest tile with <=128 padded rows
        if _round_up(B, c) - B <= 128:
            return c
    return min(candidates, key=lambda c: _round_up(B, c) - B)


def _vmem_budget_bytes(batch_tile, x_itemsize, w1_itemsize):
    """Scoped-VMEM request: double-buffered x + out + lane-padded weights + headroom,
    capped per generation (v7x has 64 MiB physical, v5e/v6e have 128 MiB)."""
    x_db = 2 * batch_tile * IN_DIM * x_itemsize
    out_db = 2 * batch_tile * LANE * 4                    # (bt, 10) pads to 128 lanes
    w_db = 2 * (IN_DIM * LANE * w1_itemsize              # w1 (3072, 32) lane-padded
                + _round_up(H1, 8) * LANE * 4             # w2
                + _round_up(H2, 8) * LANE * 4             # w3
                + 2 * 8 * LANE * 4)                       # b1, b3
    need = x_db + out_db + w_db + (8 << 20)               # + headroom
    try:
        physical = int(getattr(pltpu.get_tpu_info(), "vmem_capacity_bytes", 64 << 20))
    except Exception:  # hardware query only; never masks kernel errors
        physical = 64 << 20                                # conservative: v7x per-TC
    cap = min((3 * physical) // 4, 96 << 20)
    return int(max(32 << 20, min(need, cap)))


def _mlp2_pallas(x2d, w1, b1, w2, w3, b3, *, batch_tile, activation):
    Bp = x2d.shape[0]
    grid = (Bp // batch_tile,)

    vmem_bytes = _vmem_budget_bytes(batch_tile, x2d.dtype.itemsize, w1.dtype.itemsize)
    kernel = functools.partial(mlp2_kernel, activation=activation)

    return pl.pallas_call(
        kernel,
        out_shape=jax.ShapeDtypeStruct((Bp, OUT_DIM), jnp.float32),
        grid_spec=pltpu.PrefetchScalarGridSpec(
            num_scalar_prefetch=0,
            grid=grid,
            in_specs=[
                pl.BlockSpec((batch_tile, IN_DIM), lambda i: (i, 0)),  # x (streamed)
                # Constant-index blocks below: fetched once, not re-DMA'd per step.
                pl.BlockSpec((IN_DIM, H1), lambda i: (0, 0)),          # w1
                pl.BlockSpec((1, H1), lambda i: (0, 0)),               # b1
                pl.BlockSpec((H1, H2), lambda i: (0, 0)),              # w2
                pl.BlockSpec((H2, OUT_DIM), lambda i: (0, 0)),         # w3
                pl.BlockSpec((1, OUT_DIM), lambda i: (0, 0)),          # b3
            ],
            out_specs=pl.BlockSpec((batch_tile, OUT_DIM), lambda i: (i, 0)),
        ),
        compiler_params=pltpu.CompilerParams(
            # Batch axis is embarrassingly parallel -> shardable across v7x's 2 TCs.
            # TODO(synk): verify on a v7x profile that both TensorCores are busy; if not,
            # switch this axis to pltpu.CORE_PARALLEL.
            dimension_semantics=("parallel",),
            vmem_limit_bytes=vmem_bytes,
        ),
    )(x2d, w1, b1, w2, w3, b3)


def prepare_params(params, compute_dtype=jnp.float32):
    """One-time parameter prep: cast w1 (the only weight on the wide fc1 contraction)
    to the x-stream dtype so the fc1 matmul takes the native MXU path.  Do this once,
    not per forward call."""
    out = dict(params)
    out["w1"] = params["w1"].astype(compute_dtype)
    return out


def mlp2_forward(x, params, *, activation="relu"):
    """x: (B, 3, 32, 32) NCHW (like PyTorch), f32 or bf16.  Returns logits (B, 10) f32.

    The x stream is used in the dtype it arrives in HBM: pass bf16 x (and params run
    through prepare_params(..., jnp.bfloat16)) to halve the dominant HBM traffic
    without an extra cast pass."""
    B = x.shape[0]
    x2d = x.reshape(B, -1)                    # same flattening as torch .view(B, -1)
    assert x2d.shape[1] == IN_DIM, f"expected {IN_DIM} features, got {x2d.shape[1]}"
    compute_dtype = x2d.dtype

    w1 = params["w1"]
    if w1.dtype != compute_dtype:
        # Safety net only; hoist this via prepare_params() so it runs once, not per call.
        w1 = w1.astype(compute_dtype)
    b1, w2, w3, b3 = params["b1"], params["w2"], params["w3"], params["b3"]

    # bf16 x halves the per-row DMA, so double the tile to keep DMAs back-to-back.
    max_tile = 1024 if jnp.dtype(compute_dtype).itemsize <= 2 else 512
    bt = _select_batch_tile(B, max_tile)
    Bp = _round_up(B, bt)
    if Bp != B:
        x2d = jnp.pad(x2d, ((0, Bp - B), (0, 0)))   # padded rows sliced off below

    out = _mlp2_pallas(x2d, w1, b1, w2, w3, b3, batch_tile=bt, activation=activation)
    return out if Bp == B else out[:B]


def init_params(key):
    """PyTorch nn.Linear-style init: U(-1/sqrt(fan_in), 1/sqrt(fan_in)).
    Weights stored pre-transposed as (in, out); biases as (1, out)."""
    k1, k2, k3, k4, k5 = jax.random.split(key, 5)

    def u(k, shape, fan_in):
        bound = 1.0 / jnp.sqrt(fan_in)
        return jax.random.uniform(k, shape, jnp.float32, -bound, bound)

    return {
        "w1": u(k1, (IN_DIM, H1), IN_DIM),
        "b1": u(k2, (1, H1), IN_DIM),
        "w2": u(k3, (H1, H2), H1),
        "w3": u(k4, (H2, OUT_DIM), H2),
        "b3": u(k5, (1, OUT_DIM), H2),
    }


def reference_forward(x, params, activation="relu"):
    x2d = x.reshape(x.shape[0], -1).astype(jnp.float32)
    act = jax.nn.sigmoid if activation == "sigmoid" else jax.nn.relu
    h1 = act(x2d @ params["w1"].astype(jnp.float32) + params["b1"])
    h2 = act(h1 @ params["w2"])
    return h2 @ params["w3"] + params["b3"]


if __name__ == "__main__":
    key = jax.random.PRNGKey(0)
    kx, kp = jax.random.split(key)

    # Input spatial shape is fixed by the module (3, 32, 32); small batch, deliberately
    # NOT a multiple of 8 to exercise the padding/remainder path.
    B = 6
    x = jax.random.normal(kx, (B, 3, 32, 32), dtype=jnp.float32)
    params = init_params(kp)

    fwd = jax.jit(mlp2_forward, static_argnames=("activation",))

    # f32 relu path
    out = jax.block_until_ready(fwd(x, params, activation="relu"))
    ref = reference_forward(x, params, "relu")
    assert out.shape == (B, OUT_DIM)
    assert jnp.allclose(out, ref, atol=1e-3, rtol=1e-3), "relu path mismatch vs. reference"

    # f32 sigmoid path (looser tolerance: EUP approx reciprocal in the kernel sigmoid)
    out_s = jax.block_until_ready(fwd(x, params, activation="sigmoid"))
    ref_s = reference_forward(x, params, "sigmoid")
    assert jnp.allclose(out_s, ref_s, atol=1e-2, rtol=1e-2), "sigmoid path mismatch vs. reference"

    # bf16 x-stream path: x already bf16 in HBM, w1 cast once via prepare_params.
    # fc1 is a 3072-deep bf16 contraction (f32 accumulate) -> expect ~1e-2 level error.
    x_bf16 = x.astype(jnp.bfloat16)
    params_bf16 = prepare_params(params, jnp.bfloat16)
    out_b = jax.block_until_ready(fwd(x_bf16, params_bf16, activation="relu"))
    ref_b = reference_forward(x_bf16, params, "relu")
    assert out_b.shape == (B, OUT_DIM)
    assert jnp.allclose(out_b, ref_b, atol=5e-2, rtol=5e-2), "bf16 path mismatch vs. reference"

    print("KERNEL_OK")
</pallas_src>

<mosaic_0001>
module attributes {stable_mosaic.version = 11 : i64} {
  func.func @mlp2_kernel(%arg0: i32, %arg1: memref<8x3072xf32, #tpu.memory_space<vmem>>, %arg2: memref<3072x32xf32, #tpu.memory_space<vmem>>, %arg3: memref<1x32xf32, #tpu.memory_space<vmem>>, %arg4: memref<32x64xf32, #tpu.memory_space<vmem>>, %arg5: memref<64x10xf32, #tpu.memory_space<vmem>>, %arg6: memref<1x10xf32, #tpu.memory_space<vmem>>, %arg7: memref<8x10xf32, #tpu.memory_space<vmem>>) attributes {dimension_semantics = [#tpu.dimension_semantics<parallel>], iteration_bounds = array<i64: 1>, scalar_prefetch = 0 : i64, scratch_operands = 0 : i64, tpu.core_type = #tpu.core_type<tc>, window_params = [{transform_indices = @transform_0, window_bounds = array<i64: 8, 3072>}, {pipeline_mode = #tpu.pipeline_mode<synchronous>, transform_indices = @transform_1, window_bounds = array<i64: 3072, 32>}, {pipeline_mode = #tpu.pipeline_mode<synchronous>, transform_indices = @transform_2, window_bounds = array<i64: 1, 32>}, {pipeline_mode = #tpu.pipeline_mode<synchronous>, transform_indices = @transform_3, window_bounds = array<i64: 32, 64>}, {pipeline_mode = #tpu.pipeline_mode<synchronous>, transform_indices = @transform_4, window_bounds = array<i64: 64, 10>}, {pipeline_mode = #tpu.pipeline_mode<synchronous>, transform_indices = @transform_5, window_bounds = array<i64: 1, 10>}, {transform_indices = @transform_6, window_bounds = array<i64: 8, 10>}]} {
    %c0 = arith.constant 0 : index
    %c0_0 = arith.constant 0 : index
    %0 = vector.load %arg1[%c0, %c0_0] : memref<8x3072xf32, #tpu.memory_space<vmem>>, vector<8x3072xf32>
    %c0_1 = arith.constant 0 : index
    %c0_2 = arith.constant 0 : index
    %1 = vector.load %arg2[%c0_1, %c0_2] : memref<3072x32xf32, #tpu.memory_space<vmem>>, vector<3072x32xf32>
    %cst = arith.constant dense<0.000000e+00> : vector<8x32xf32>
    %2 = tpu.matmul %0, %1, %cst {dimension_numbers = #tpu.dot_dimension_numbers<[1], [0], [0], [1], [0, 0, 1, 1], [], []>} : vector<8x3072xf32>, vector<3072x32xf32>, vector<8x32xf32> -> vector<8x32xf32>
    %c0_3 = arith.constant 0 : index
    %c0_4 = arith.constant 0 : index
    %3 = vector.load %arg3[%c0_3, %c0_4] : memref<1x32xf32, #tpu.memory_space<vmem>>, vector<1x32xf32>
    %4 = vector.broadcast %3 : vector<1x32xf32> to vector<8x32xf32>
    %5 = arith.addf %2, %4 : vector<8x32xf32>
    %cst_5 = arith.constant 0.000000e+00 : f32
    %6 = vector.broadcast %cst_5 : f32 to vector<8x32xf32>
    %7 = arith.maximumf %5, %6 : vector<8x32xf32>
    %c0_6 = arith.constant 0 : index
    %c0_7 = arith.constant 0 : index
    %8 = vector.load %arg4[%c0_6, %c0_7] : memref<32x64xf32, #tpu.memory_space<vmem>>, vector<32x64xf32>
    %cst_8 = arith.constant dense<0.000000e+00> : vector<8x64xf32>
    %9 = tpu.matmul %7, %8, %cst_8 {dimension_numbers = #tpu.dot_dimension_numbers<[1], [0], [0], [1], [0, 0, 1, 1], [], []>} : vector<8x32xf32>, vector<32x64xf32>, vector<8x64xf32> -> vector<8x64xf32>
    %cst_9 = arith.constant 0.000000e+00 : f32
    %10 = vector.broadcast %cst_9 : f32 to vector<8x64xf32>
    %11 = arith.maximumf %9, %10 : vector<8x64xf32>
    %c0_10 = arith.constant 0 : index
    %c0_11 = arith.constant 0 : index
    %12 = vector.load %arg5[%c0_10, %c0_11] : memref<64x10xf32, #tpu.memory_space<vmem>>, vector<64x10xf32>
    %cst_12 = arith.constant dense<0.000000e+00> : vector<8x10xf32>
    %13 = tpu.matmul %11, %12, %cst_12 {dimension_numbers = #tpu.dot_dimension_numbers<[1], [0], [0], [1], [0, 0, 1, 1], [], []>} : vector<8x64xf32>, vector<64x10xf32>, vector<8x10xf32> -> vector<8x10xf32>
    %c0_13 = arith.constant 0 : index
    %c0_14 = arith.constant 0 : index
    %14 = vector.load %arg6[%c0_13, %c0_14] : memref<1x10xf32, #tpu.memory_space<vmem>>, vector<1x10xf32>
    %15 = vector.broadcast %14 : vector<1x10xf32> to vector<8x10xf32>
    %16 = arith.addf %13, %15 : vector<8x10xf32>
    %c0_15 = arith.constant 0 : index
    %c0_16 = arith.constant 0 : index
    %17 = vector.load %arg7[%c0_15, %c0_16] : memref<8x10xf32, #tpu.memory_space<vmem>>, vector<8x10xf32>
    tpu.vector_store %arg7[%c0_15, %c0_16], %16 {strides = array<i32>} : memref<8x10xf32, #tpu.memory_space<vmem>>, vector<8x10xf32>,
    return
  }
  func.func @transform_0(%arg0: i32) -> (i32, i32) {
    %c0_i32 = arith.constant 0 : i32
    %c0_i32_0 = arith.constant 0 : i32
    return %arg0, %c0_i32 : i32, i32
  }
  func.func @transform_1(%arg0: i32) -> (i32, i32) {
    %c0_i32 = arith.constant 0 : i32
    %c0_i32_0 = arith.constant 0 : i32
    %c0_i32_1 = arith.constant 0 : i32
    return %c0_i32, %c0_i32_0 : i32, i32
  }
  func.func @transform_2(%arg0: i32) -> (i32, i32) {
    %c0_i32 = arith.constant 0 : i32
    %c0_i32_0 = arith.constant 0 : i32
    %c0_i32_1 = arith.constant 0 : i32
    return %c0_i32, %c0_i32_0 : i32, i32
  }
  func.func @transform_3(%arg0: i32) -> (i32, i32) {
    %c0_i32 = arith.constant 0 : i32
    %c0_i32_0 = arith.constant 0 : i32
    %c0_i32_1 = arith.constant 0 : i32
    return %c0_i32, %c0_i32_0 : i32, i32
  }
  func.func @transform_4(%arg0: i32) -> (i32, i32) {
    %c0_i32 = arith.constant 0 : i32
    %c0_i32_0 = arith.constant 0 : i32
    %c0_i32_1 = arith.constant 0 : i32
    return %c0_i32, %c0_i32_0 : i32, i32
  }
  func.func @transform_5(%arg0: i32) -> (i32, i32) {
    %c0_i32 = arith.constant 0 : i32
    %c0_i32_0 = arith.constant 0 : i32
    %c0_i32_1 = arith.constant 0 : i32
    return %c0_i32, %c0_i32_0 : i32, i32
  }
  func.func @transform_6(%arg0: i32) -> (i32, i32) {
    %c0_i32 = arith.constant 0 : i32
    %c0_i32_0 = arith.constant 0 : i32
    return %arg0, %c0_i32 : i32, i32
  }
}

</mosaic_0001>

<llo_original>
// kernel: mlp2_forward.1
$region0: #{mlp2_forward.1}
  #allocation0 [shape = 'u32[]', space=smem, size = 0x4, offset = 0x4, fixed_abs, tag = 'smem constant byte address 0x4 - core index']
  #allocation1 [shape = 'u32[72,128]{1,0:T(1,128)}', space=vmem, size = 0x9000, scoped, tag = 'internal scratch']
  %s0 = inlined_call_operand.vmem [shape: f32[8,3072], index: 0, kind: input, shape index: {}]
  %s1 = inlined_call_operand.vmem [shape: f32[3072,32], index: 1, kind: input, shape index: {}]
  %s2 = inlined_call_operand.vmem [shape: f32[1,32], index: 2, kind: input, shape index: {}]
  %s3 = inlined_call_operand.vmem [shape: f32[32,64], index: 3, kind: input, shape index: {}]
  %s4 = inlined_call_operand.vmem [shape: f32[64,10], index: 4, kind: input, shape index: {}]
  %s5 = inlined_call_operand.vmem [shape: f32[1,10], index: 5, kind: input, shape index: {}]
  %s6 = inlined_call_operand.hbm [shape: f32[8,10], index: 6, kind: output, shape index: {}]
  %s7 = sld [smem:[#allocation0]]
  $region34: #{mlp2_forward.1} parent=0
    _
  %s9 = ssub.s32 1, %s7
  %s10 = scalar_select 0, %s9, %s7
  $region1: #{mlp2_forward.1} parent=0
    #allocation2 [shape = 'u8[4096]{0}', space=vmem, size = 0x1000, scoped, tag = 'output window, operand 0, single buffered']
    #allocation3 [shape = 's32[1]{0}', space=sflag, size = 0x4, scoped, tag = 'scoped memory for mlp2_forward.1']
    %11 = vsyncpa [#allocation3], 0
    // Predicated region
    $region2: #{mlp2_forward.1} parent=1 // pred_check
      _
    $region3: #{mlp2_forward.1} parent=1 // pred_check_branch
      %13 = sbr.rel (0) target = $region5
    $region4: #{mlp2_forward.1} parent=1 // pred_region
      _
    $region5: #{mlp2_forward.1} parent=1 // pred_fallthru
      _
    // Predicated region
    $region6: #{mlp2_forward.1} parent=1 // pred_check
      _
    $region7: #{mlp2_forward.1} parent=1 // pred_check_branch
      %15 = sbr.rel (0) target = $region9
    $region8: #{mlp2_forward.1} parent=1 // pred_region
      _
    $region9: #{mlp2_forward.1} parent=1 // pred_fallthru
      _
    // Predicated region
    $region10: #{mlp2_forward.1} parent=1 // pred_check
      _
    $region11: #{mlp2_forward.1} parent=1 // pred_check_branch
      %17 = sbr.rel (0) target = $region13
    $region12: #{mlp2_forward.1} parent=1 // pred_region
      _
    $region13: #{mlp2_forward.1} parent=1 // pred_fallthru
      _
    // Predicated region
    $region14: #{mlp2_forward.1} parent=1 // pred_check
      _
    $region15: #{mlp2_forward.1} parent=1 // pred_check_branch
      %19 = sbr.rel (0) target = $region17
    $region16: #{mlp2_forward.1} parent=1 // pred_region
      _
    $region17: #{mlp2_forward.1} parent=1 // pred_fallthru
      _
    // Predicated region
    $region18: #{mlp2_forward.1} parent=1 // pred_check
      _
    $region19: #{mlp2_forward.1} parent=1 // pred_check_branch
      %21 = sbr.rel (0) target = $region21
    $region20: #{mlp2_forward.1} parent=1 // pred_region
      _
    $region21: #{mlp2_forward.1} parent=1 // pred_fallthru
      _
    // Predicated region
    $region22: #{mlp2_forward.1} parent=1 // pred_check
      _
    $region23: #{mlp2_forward.1} parent=1 // pred_check_branch
      %23 = sbr.rel (0) target = $region25
    $region24: #{mlp2_forward.1} parent=1 // pred_region
      _
    $region25: #{mlp2_forward.1} parent=1 // pred_fallthru
      _
    %v24 = vld [vmem:[%s0] sm:$0xff]
    %v25 = vld [vmem:[%s0 + $0x8] sm:$0xff]
    %v26 = vld [vmem:[%s0 + $0x10] sm:$0xff]
    %v27 = vld [vmem:[%s0 + $0x18] sm:$0xff]
    %v28 = vld [vmem:[%s0 + $0x20] sm:$0xff]
    %v29 = vld [vmem:[%s0 + $0x28] sm:$0xff]
    %v30 = vld [vmem:[%s0 + $0x30] sm:$0xff]
    %v31 = vld [vmem:[%s0 + $0x38] sm:$0xff]
    %v32 = vld [vmem:[%s0 + $0x40] sm:$0xff]
    %v33 = vld [vmem:[%s0 + $0x48] sm:$0xff]
    %v34 = vld [vmem:[%s0 + $0x50] sm:$0xff]
    %v35 = vld [vmem:[%s0 + $0x58] sm:$0xff]
    %v36 = vld [vmem:[%s0 + $0x60] sm:$0xff]
    %v37 = vld [vmem:[%s0 + $0x68] sm:$0xff]
    %v38 = vld [vmem:[%s0 + $0x70] sm:$0xff]
    %v39 = vld [vmem:[%s0 + $0x78] sm:$0xff]
    %v40 = vld [vmem:[%s0 + $0x80] sm:$0xff]
    %v41 = vld [vmem:[%s0 + $0x88] sm:$0xff]
    %v42 = vld [vmem:[%s0 + $0x90] sm:$0xff]
    %v43 = vld [vmem:[%s0 + $0x98] sm:$0xff]
    %v44 = vld [vmem:[%s0 + $0xa0] sm:$0xff]
    %v45 = vld [vmem:[%s0 + $0xa8] sm:$0xff]
    %v46 = vld [vmem:[%s0 + $0xb0] sm:$0xff]
    %v47 = vld [vmem:[%s0 + $0xb8] sm:$0xff]
    %v48 = vld [vmem:[%s1] sm:$0xff]
    %v49 = vld [vmem:[%s1 + $0x8] sm:$0xff]
    %v50 = vld [vmem:[%s1 + $0x10] sm:$0xff]
    %v51 = vld [vmem:[%s1 + $0x18] sm:$0xff]
    %v52 = vld [vmem:[%s1 + $0x20] sm:$0xff]
    %v53 = vld [vmem:[%s1 + $0x28] sm:$0xff]
    %v54 = vld [vmem:[%s1 + $0x30] sm:$0xff]
    %v55 = vld [vmem:[%s1 + $0x38] sm:$0xff]
    %v56 = vld [vmem:[%s1 + $0x40] sm:$0xff]
    %v57 = vld [vmem:[%s1 + $0x48] sm:$0xff]
    %v58 = vld [vmem:[%s1 + $0x50] sm:$0xff]
    %v59 = vld [vmem:[%s1 + $0x58] sm:$0xff]
    %v60 = vld [vmem:[%s1 + $0x60] sm:$0xff]
    %v61 = vld [vmem:[%s1 + $0x68] sm:$0xff]
    %v62 = vld [vmem:[%s1 + $0x70] sm:$0xff]
    %v63 = vld [vmem:[%s1 + $0x78] sm:$0xff]
    %v64 = vld [vmem:[%s1 + $0x80] sm:$0xff]
    %v65 = vld [vmem:[%s1 + $0x88] sm:$0xff]
    %v66 = vld [vmem:[%s1 + $0x90] sm:$0xff]
    %v67 = vld [vmem:[%s1 + $0x98] sm:$0xff]
    %v68 = vld [vmem:[%s1 + $0xa0] sm:$0xff]
    %v69 = vld [vmem:[%s1 + $0xa8] sm:$0xff]
    %v70 = vld [vmem:[%s1 + $0xb0] sm:$0xff]
    %v71 = vld [vmem:[%s1 + $0xb8] sm:$0xff]
    %v72 = vld [vmem:[%s1 + $0xc0] sm:$0xff]
    %v73 = vld [vmem:[%s1 + $0xc8] sm:$0xff]
    %v74 = vld [vmem:[%s1 + $0xd0] sm:$0xff]
    %v75 = vld [vmem:[%s1 + $0xd8] sm:$0xff]
    %v76 = vld [vmem:[%s1 + $0xe0] sm:$0xff]
    %v77 = vld [vmem:[%s1 + $0xe8] sm:$0xff]
    %v78 = vld [vmem:[%s1 + $0xf0] sm:$0xff]
    %v79 = vld [vmem:[%s1 + $0xf8] sm:$0xff]
    %v80 = vld [vmem:[%s1 + $0x100] sm:$0xff]
    %v81 = vld [vmem:[%s1 + $0x108] sm:$0xff]
    %v82 = vld [vmem:[%s1 + $0x110] sm:$0xff]
    %v83 = vld [vmem:[%s1 + $0x118] sm:$0xff]
    %v84 = vld [vmem:[%s1 + $0x120] sm:$0xff]
    %v85 = vld [vmem:[%s1 + $0x128] sm:$0xff]
    %v86 = vld [vmem:[%s1 + $0x130] sm:$0xff]
    %v87 = vld [vmem:[%s1 + $0x138] sm:$0xff]
    %v88 = vld [vmem:[%s1 + $0x140] sm:$0xff]
    %v89 = vld [vmem:[%s1 + $0x148] sm:$0xff]
    %v90 = vld [vmem:[%s1 + $0x150] sm:$0xff]
    %v91 = vld [vmem:[%s1 + $0x158] sm:$0xff]
    %v92 = vld [vmem:[%s1 + $0x160] sm:$0xff]
    %v93 = vld [vmem:[%s1 + $0x168] sm:$0xff]
    %v94 = vld [vmem:[%s1 + $0x170] sm:$0xff]
    %v95 = vld [vmem:[%s1 + $0x178] sm:$0xff]
    %v96 = vld [vmem:[%s1 + $0x180] sm:$0xff]
    %v97 = vld [vmem:[%s1 + $0x188] sm:$0xff]
    %v98 = vld [vmem:[%s1 + $0x190] sm:$0xff]
    %v99 = vld [vmem:[%s1 + $0x198] sm:$0xff]
    %v100 = vld [vmem:[%s1 + $0x1a0] sm:$0xff]
    %v101 = vld [vmem:[%s1 + $0x1a8] sm:$0xff]
    %v102 = vld [vmem:[%s1 + $0x1b0] sm:$0xff]
    %v103 = vld [vmem:[%s1 + $0x1b8] sm:$0xff]
    %v104 = vld [vmem:[%s1 + $0x1c0] sm:$0xff]
    %v105 = vld [vmem:[%s1 + $0x1c8] sm:$0xff]
    %v106 = vld [vmem:[%s1 + $0x1d0] sm:$0xff]
    %v107 = vld [vmem:[%s1 + $0x1d8] sm:$0xff]
    %v108 = vld [vmem:[%s1 + $0x1e0] sm:$0xff]
    %v109 = vld [vmem:[%s1 + $0x1e8] sm:$0xff]
    %v110 = vld [vmem:[%s1 + $0x1f0] sm:$0xff]
    %v111 = vld [vmem:[%s1 + $0x1f8] sm:$0xff]
    %v112 = vld [vmem:[%s1 + $0x200] sm:$0xff]
    %v113 = vld [vmem:[%s1 + $0x208] sm:$0xff]
    %v114 = vld [vmem:[%s1 + $0x210] sm:$0xff]
    %v115 = vld [vmem:[%s1 + $0x218] sm:$0xff]
    %v116 = vld [vmem:[%s1 + $0x220] sm:$0xff]
    %v117 = vld [vmem:[%s1 + $0x228] sm:$0xff]
    %v118 = vld [vmem:[%s1 + $0x230] sm:$0xff]
    %v119 = vld [vmem:[%s1 + $0x238] sm:$0xff]
    %v120 = vld [vmem:[%s1 + $0x240] sm:$0xff]
    %v121 = vld [vmem:[%s1 + $0x248] sm:$0xff]
    %v122 = vld [vmem:[%s1 + $0x250] sm:$0xff]
    %v123 = vld [vmem:[%s1 + $0x258] sm:$0xff]
    %v124 = vld [vmem:[%s1 + $0x260] sm:$0xff]
    %v125 = vld [vmem:[%s1 + $0x268] sm:$0xff]
    %v126 = vld [vmem:[%s1 + $0x270] sm:$0xff]
    %v127 = vld [vmem:[%s1 + $0x278] sm:$0xff]
    %v128 = vld [vmem:[%s1 + $0x280] sm:$0xff]
    %v129 = vld [vmem:[%s1 + $0x288] sm:$0xff]
    %v130 = vld [vmem:[%s1 + $0x290] sm:$0xff]
    %v131 = vld [vmem:[%s1 + $0x298] sm:$0xff]
    %v132 = vld [vmem:[%s1 + $0x2a0] sm:$0xff]
    %v133 = vld [vmem:[%s1 + $0x2a8] sm:$0xff]
    %v134 = vld [vmem:[%s1 + $0x2b0] sm:$0xff]
    %v135 = vld [vmem:[%s1 + $0x2b8] sm:$0xff]
    %v136 = vld [vmem:[%s1 + $0x2c0] sm:$0xff]
    %v137 = vld [vmem:[%s1 + $0x2c8] sm:$0xff]
    %v138 = vld [vmem:[%s1 + $0x2d0] sm:$0xff]
    %v139 = vld [vmem:[%s1 + $0x2d8] sm:$0xff]
    %v140 = vld [vmem:[%s1 + $0x2e0] sm:$0xff]
    %v141 = vld [vmem:[%s1 + $0x2e8] sm:$0xff]
    %v142 = vld [vmem:[%s1 + $0x2f0] sm:$0xff]
    %v143 = vld [vmem:[%s1 + $0x2f8] sm:$0xff]
    %v144 = vld [vmem:[%s1 + $0x300] sm:$0xff]
    %v145 = vld [vmem:[%s1 + $0x308] sm:$0xff]
    %v146 = vld [vmem:[%s1 + $0x310] sm:$0xff]
    %v147 = vld [vmem:[%s1 + $0x318] sm:$0xff]
    %v148 = vld [vmem:[%s1 + $0x320] sm:$0xff]
    %v149 = vld [vmem:[%s1 + $0x328] sm:$0xff]
    %v150 = vld [vmem:[%s1 + $0x330] sm:$0xff]
    %v151 = vld [vmem:[%s1 + $0x338] sm:$0xff]
    %v152 = vld [vmem:[%s1 + $0x340] sm:$0xff]
    %v153 = vld [vmem:[%s1 + $0x348] sm:$0xff]
    %v154 = vld [vmem:[%s1 + $0x350] sm:$0xff]
    %v155 = vld [vmem:[%s1 + $0x358] sm:$0xff]
    %v156 = vld [vmem:[%s1 + $0x360] sm:$0xff]
    %v157 = vld [vmem:[%s1 + $0x368] sm:$0xff]
    %v158 = vld [vmem:[%s1 + $0x370] sm:$0xff]
    %v159 = vld [vmem:[%s1 + $0x378] sm:$0xff]
    %v160 = vld [vmem:[%s1 + $0x380] sm:$0xff]
    %v161 = vld [vmem:[%s1 + $0x388] sm:$0xff]
    %v162 = vld [vmem:[%s1 + $0x390] sm:$0xff]
    %v163 = vld [vmem:[%s1 + $0x398] sm:$0xff]
    %v164 = vld [vmem:[%s1 + $0x3a0] sm:$0xff]
    %v165 = vld [vmem:[%s1 + $0x3a8] sm:$0xff]
    %v166 = vld [vmem:[%s1 + $0x3b0] sm:$0xff]
    %v167 = vld [vmem:[%s1 + $0x3b8] sm:$0xff]
    %v168 = vld [vmem:[%s1 + $0x3c0] sm:$0xff]
    %v169 = vld [vmem:[%s1 + $0x3c8] sm:$0xff]
    %v170 = vld [vmem:[%s1 + $0x3d0] sm:$0xff]
    %v171 = vld [vmem:[%s1 + $0x3d8] sm:$0xff]
    %v172 = vld [vmem:[%s1 + $0x3e0] sm:$0xff]
    %v173 = vld [vmem:[%s1 + $0x3e8] sm:$0xff]
    %v174 = vld [vmem:[%s1 + $0x3f0] sm:$0xff]
    %v175 = vld [vmem:[%s1 + $0x3f8] sm:$0xff]
    %v176 = vld [vmem:[%s1 + $0x400] sm:$0xff]
    %v177 = vld [vmem:[%s1 + $0x408] sm:$0xff]
    %v178 = vld [vmem:[%s1 + $0x410] sm:$0xff]
    %v179 = vld [vmem:[%s1 + $0x418] sm:$0xff]
    %v180 = vld [vmem:[%s1 + $0x420] sm:$0xff]
    %v181 = vld [vmem:[%s1 + $0x428] sm:$0xff]
    %v182 = vld [vmem:[%s1 + $0x430] sm:$0xff]
    %v183 = vld [vmem:[%s1 + $0x438] sm:$0xff]
    %v184 = vld [vmem:[%s1 + $0x440] sm:$0xff]
    %v185 = vld [vmem:[%s1 + $0x448] sm:$0xff]
    %v186 = vld [vmem:[%s1 + $0x450] sm:$0xff]
    %v187 = vld [vmem:[%s1 + $0x458] sm:$0xff]
    %v188 = vld [vmem:[%s1 + $0x460] sm:$0xff]
    %v189 = vld [vmem:[%s1 + $0x468] sm:$0xff]
    %v190 = vld [vmem:[%s1 + $0x470] sm:$0xff]
    %v191 = vld [vmem:[%s1 + $0x478] sm:$0xff]
    %v192 = vld [vmem:[%s1 + $0x480] sm:$0xff]
    %v193 = vld [vmem:[%s1 + $0x488] sm:$0xff]
    %v194 = vld [vmem:[%s1 + $0x490] sm:$0xff]
    %v195 = vld [vmem:[%s1 + $0x498] sm:$0xff]
    %v196 = vld [vmem:[%s1 + $0x4a0] sm:$0xff]
    %v197 = vld [vmem:[%s1 + $0x4a8] sm:$0xff]
    %v198 = vld [vmem:[%s1 + $0x4b0] sm:$0xff]
    %v199 = vld [vmem:[%s1 + $0x4b8] sm:$0xff]
    %v200 = vld [vmem:[%s1 + $0x4c0] sm:$0xff]
    %v201 = vld [vmem:[%s1 + $0x4c8] sm:$0xff]
    %v202 = vld [vmem:[%s1 + $0x4d0] sm:$0xff]
    %v203 = vld [vmem:[%s1 + $0x4d8] sm:$0xff]
    %v204 = vld [vmem:[%s1 + $0x4e0] sm:$0xff]
    %v205 = vld [vmem:[%s1 + $0x4e8] sm:$0xff]
    %v206 = vld [vmem:[%s1 + $0x4f0] sm:$0xff]
    %v207 = vld [vmem:[%s1 + $0x4f8] sm:$0xff]
    %v208 = vld [vmem:[%s1 + $0x500] sm:$0xff]
    %v209 = vld [vmem:[%s1 + $0x508] sm:$0xff]
    %v210 = vld [vmem:[%s1 + $0x510] sm:$0xff]
    %v211 = vld [vmem:[%s1 + $0x518] sm:$0xff]
    %v212 = vld [vmem:[%s1 + $0x520] sm:$0xff]
    %v213 = vld [vmem:[%s1 + $0x528] sm:$0xff]
    %v214 = vld [vmem:[%s1 + $0x530] sm:$0xff]
    %v215 = vld [vmem:[%s1 + $0x538] sm:$0xff]
    %v216 = vld [vmem:[%s1 + $0x540] sm:$0xff]
    %v217 = vld [vmem:[%s1 + $0x548] sm:$0xff]
    %v218 = vld [vmem:[%s1 + $0x550] sm:$0xff]
    %v219 = vld [vmem:[%s1 + $0x558] sm:$0xff]
    %v220 = vld [vmem:[%s1 + $0x560] sm:$0xff]
    %v221 = vld [vmem:[%s1 + $0x568] sm:$0xff]
    %v222 = vld [vmem:[%s1 + $0x570] sm:$0xff]
    %v223 = vld [vmem:[%s1 + $0x578] sm:$0xff]
    %v224 = vld [vmem:[%s1 + $0x580] sm:$0xff]
    %v225 = vld [vmem:[%s1 + $0x588] sm:$0xff]
    %v226 = vld [vmem:[%s1 + $0x590] sm:$0xff]
    %v227 = vld [vmem:[%s1 + $0x598] sm:$0xff]
    %v228 = vld [vmem:[%s1 + $0x5a0] sm:$0xff]
    %v229 = vld [vmem:[%s1 + $0x5a8] sm:$0xff]
    %v230 = vld [vmem:[%s1 + $0x5b0] sm:$0xff]
    %v231 = vld [vmem:[%s1 + $0x5b8] sm:$0xff]
    %v232 = vld [vmem:[%s1 + $0x5c0] sm:$0xff]
    %v233 = vld [vmem:[%s1 + $0x5c8] sm:$0xff]
    %v234 = vld [vmem:[%s1 + $0x5d0] sm:$0xff]
    %v235 = vld [vmem:[%s1 + $0x5d8] sm:$0xff]
    %v236 = vld [vmem:[%s1 + $0x5e0] sm:$0xff]
    %v237 = vld [vmem:[%s1 + $0x5e8] sm:$0xff]
    %v238 = vld [vmem:[%s1 + $0x5f0] sm:$0xff]
    %v239 = vld [vmem:[%s1 + $0x5f8] sm:$0xff]
    %v240 = vld [vmem:[%s1 + $0x600] sm:$0xff]
    %v241 = vld [vmem:[%s1 + $0x608] sm:$0xff]
    %v242 = vld [vmem:[%s1 + $0x610] sm:$0xff]
    %v243 = vld [vmem:[%s1 + $0x618] sm:$0xff]
    %v244 = vld [vmem:[%s1 + $0x620] sm:$0xff]
    %v245 = vld [vmem:[%s1 + $0x628] sm:$0xff]
    %v246 = vld [vmem:[%s1 + $0x630] sm:$0xff]
    %v247 = vld [vmem:[%s1 + $0x638] sm:$0xff]
    %v248 = vld [vmem:[%s1 + $0x640] sm:$0xff]
    %v249 = vld [vmem:[%s1 + $0x648] sm:$0xff]
    %v250 = vld [vmem:[%s1 + $0x650] sm:$0xff]
    %v251 = vld [vmem:[%s1 + $0x658] sm:$0xff]
    %v252 = vld [vmem:[%s1 + $0x660] sm:$0xff]
    %v253 = vld [vmem:[%s1 + $0x668] sm:$0xff]
    %v254 = vld [vmem:[%s1 + $0x670] sm:$0xff]
    %v255 = vld [vmem:[%s1 + $0x678] sm:$0xff]
    %v256 = vld [vmem:[%s1 + $0x680] sm:$0xff]
    %v257 = vld [vmem:[%s1 + $0x688] sm:$0xff]
    %v258 = vld [vmem:[%s1 + $0x690] sm:$0xff]
    %v259 = vld [vmem:[%s1 + $0x698] sm:$0xff]
    %v260 = vld [vmem:[%s1 + $0x6a0] sm:$0xff]
    %v261 = vld [vmem:[%s1 + $0x6a8] sm:$0xff]
    %v262 = vld [vmem:[%s1 + $0x6b0] sm:$0xff]
    %v263 = vld [vmem:[%s1 + $0x6b8] sm:$0xff]
    %v264 = vld [vmem:[%s1 + $0x6c0] sm:$0xff]
    %v265 = vld [vmem:[%s1 + $0x6c8] sm:$0xff]
    %v266 = vld [vmem:[%s1 + $0x6d0] sm:$0xff]
    %v267 = vld [vmem:[%s1 + $0x6d8] sm:$0xff]
    %v268 = vld [vmem:[%s1 + $0x6e0] sm:$0xff]
    %v269 = vld [vmem:[%s1 + $0x6e8] sm:$0xff]
    %v270 = vld [vmem:[%s1 + $0x6f0] sm:$0xff]
    %v271 = vld [vmem:[%s1 + $0x6f8] sm:$0xff]
    %v272 = vld [vmem:[%s1 + $0x700] sm:$0xff]
    %v273 = vld [vmem:[%s1 + $0x708] sm:$0xff]
    %v274 = vld [vmem:[%s1 + $0x710] sm:$0xff]
    %v275 = vld [vmem:[%s1 + $0x718] sm:$0xff]
    %v276 = vld [vmem:[%s1 + $0x720] sm:$0xff]
    %v277 = vld [vmem:[%s1 + $0x728] sm:$0xff]
    %v278 = vld [vmem:[%s1 + $0x730] sm:$0xff]
    %v279 = vld [vmem:[%s1 + $0x738] sm:$0xff]
    %v280 = vld [vmem:[%s1 + $0x740] sm:$0xff]
    %v281 = vld [vmem:[%s1 + $0x748] sm:$0xff]
    %v282 = vld [vmem:[%s1 + $0x750] sm:$0xff]
    %v283 = vld [vmem:[%s1 + $0x758] sm:$0xff]
    %v284 = vld [vmem:[%s1 + $0x760] sm:$0xff]
    %v285 = vld [vmem:[%s1 + $0x768] sm:$0xff]
    %v286 = vld [vmem:[%s1 + $0x770] sm:$0xff]
    %v287 = vld [vmem:[%s1 + $0x778] sm:$0xff]
    %v288 = vld [vmem:[%s1 + $0x780] sm:$0xff]
    %v289 = vld [vmem:[%s1 + $0x788] sm:$0xff]
    %v290 = vld [vmem:[%s1 + $0x790] sm:$0xff]
    %v291 = vld [vmem:[%s1 + $0x798] sm:$0xff]
    %v292 = vld [vmem:[%s1 + $0x7a0] sm:$0xff]
    %v293 = vld [vmem:[%s1 + $0x7a8] sm:$0xff]
    %v294 = vld [vmem:[%s1 + $0x7b0] sm:$0xff]
    %v295 = vld [vmem:[%s1 + $0x7b8] sm:$0xff]
    %v296 = vld [vmem:[%s1 + $0x7c0] sm:$0xff]
    %v297 = vld [vmem:[%s1 + $0x7c8] sm:$0xff]
    %v298 = vld [vmem:[%s1 + $0x7d0] sm:$0xff]
    %v299 = vld [vmem:[%s1 + $0x7d8] sm:$0xff]
    %v300 = vld [vmem:[%s1 + $0x7e0] sm:$0xff]
    %v301 = vld [vmem:[%s1 + $0x7e8] sm:$0xff]
    %v302 = vld [vmem:[%s1 + $0x7f0] sm:$0xff]
    %v303 = vld [vmem:[%s1 + $0x7f8] sm:$0xff]
    %v304 = vld [vmem:[%s1 + $0x800] sm:$0xff]
    %v305 = vld [vmem:[%s1 + $0x808] sm:$0xff]
    %v306 = vld [vmem:[%s1 + $0x810] sm:$0xff]
    %v307 = vld [vmem:[%s1 + $0x818] sm:$0xff]
    %v308 = vld [vmem:[%s1 + $0x820] sm:$0xff]
    %v309 = vld [vmem:[%s1 + $0x828] sm:$0xff]
    %v310 = vld [vmem:[%s1 + $0x830] sm:$0xff]
    %v311 = vld [vmem:[%s1 + $0x838] sm:$0xff]
    %v312 = vld [vmem:[%s1 + $0x840] sm:$0xff]
    %v313 = vld [vmem:[%s1 + $0x848] sm:$0xff]
    %v314 = vld [vmem:[%s1 + $0x850] sm:$0xff]
    %v315 = vld [vmem:[%s1 + $0x858] sm:$0xff]
    %v316 = vld [vmem:[%s1 + $0x860] sm:$0xff]
    %v317 = vld [vmem:[%s1 + $0x868] sm:$0xff]
    %v318 = vld [vmem:[%s1 + $0x870] sm:$0xff]
    %v319 = vld [vmem:[%s1 + $0x878] sm:$0xff]
    %v320 = vld [vmem:[%s1 + $0x880] sm:$0xff]
    %v321 = vld [vmem:[%s1 + $0x888] sm:$0xff]
    %v322 = vld [vmem:[%s1 + $0x890] sm:$0xff]
    %v323 = vld [vmem:[%s1 + $0x898] sm:$0xff]
    %v324 = vld [vmem:[%s1 + $0x8a0] sm:$0xff]
    %v325 = vld [vmem:[%s1 + $0x8a8] sm:$0xff]
    %v326 = vld [vmem:[%s1 + $0x8b0] sm:$0xff]
    %v327 = vld [vmem:[%s1 + $0x8b8] sm:$0xff]
    %v328 = vld [vmem:[%s1 + $0x8c0] sm:$0xff]
    %v329 = vld [vmem:[%s1 + $0x8c8] sm:$0xff]
    %v330 = vld [vmem:[%s1 + $0x8d0] sm:$0xff]
    %v331 = vld [vmem:[%s1 + $0x8d8] sm:$0xff]
    %v332 = vld [vmem:[%s1 + $0x8e0] sm:$0xff]
    %v333 = vld [vmem:[%s1 + $0x8e8] sm:$0xff]
    %v334 = vld [vmem:[%s1 + $0x8f0] sm:$0xff]
    %v335 = vld [vmem:[%s1 + $0x8f8] sm:$0xff]
    %v336 = vld [vmem:[%s1 + $0x900] sm:$0xff]
    %v337 = vld [vmem:[%s1 + $0x908] sm:$0xff]
    %v338 = vld [vmem:[%s1 + $0x910] sm:$0xff]
    %v339 = vld [vmem:[%s1 + $0x918] sm:$0xff]
    %v340 = vld [vmem:[%s1 + $0x920] sm:$0xff]
    %v341 = vld [vmem:[%s1 + $0x928] sm:$0xff]
    %v342 = vld [vmem:[%s1 + $0x930] sm:$0xff]
    %v343 = vld [vmem:[%s1 + $0x938] sm:$0xff]
    %v344 = vld [vmem:[%s1 + $0x940] sm:$0xff]
    %v345 = vld [vmem:[%s1 + $0x948] sm:$0xff]
    %v346 = vld [vmem:[%s1 + $0x950] sm:$0xff]
    %v347 = vld [vmem:[%s1 + $0x958] sm:$0xff]
    %v348 = vld [vmem:[%s1 + $0x960] sm:$0xff]
    %v349 = vld [vmem:[%s1 + $0x968] sm:$0xff]
    %v350 = vld [vmem:[%s1 + $0x970] sm:$0xff]
    %v351 = vld [vmem:[%s1 + $0x978] sm:$0xff]
    %v352 = vld [vmem:[%s1 + $0x980] sm:$0xff]
    %v353 = vld [vmem:[%s1 + $0x988] sm:$0xff]
    %v354 = vld [vmem:[%s1 + $0x990] sm:$0xff]
    %v355 = vld [vmem:[%s1 + $0x998] sm:$0xff]
    %v356 = vld [vmem:[%s1 + $0x9a0] sm:$0xff]
    %v357 = vld [vmem:[%s1 + $0x9a8] sm:$0xff]
    %v358 = vld [vmem:[%s1 + $0x9b0] sm:$0xff]
    %v359 = vld [vmem:[%s1 + $0x9b8] sm:$0xff]
    %v360 = vld [vmem:[%s1 + $0x9c0] sm:$0xff]
    %v361 = vld [vmem:[%s1 + $0x9c8] sm:$0xff]
    %v362 = vld [vmem:[%s1 + $0x9d0] sm:$0xff]
    %v363 = vld [vmem:[%s1 + $0x9d8] sm:$0xff]
    %v364 = vld [vmem:[%s1 + $0x9e0] sm:$0xff]
    %v365 = vld [vmem:[%s1 + $0x9e8] sm:$0xff]
    %v366 = vld [vmem:[%s1 + $0x9f0] sm:$0xff]
    %v367 = vld [vmem:[%s1 + $0x9f8] sm:$0xff]
    %v368 = vld [vmem:[%s1 + $0xa00] sm:$0xff]
    %v369 = vld [vmem:[%s1 + $0xa08] sm:$0xff]
    %v370 = vld [vmem:[%s1 + $0xa10] sm:$0xff]
    %v371 = vld [vmem:[%s1 + $0xa18] sm:$0xff]
    %v372 = vld [vmem:[%s1 + $0xa20] sm:$0xff]
    %v373 = vld [vmem:[%s1 + $0xa28] sm:$0xff]
    %v374 = vld [vmem:[%s1 + $0xa30] sm:$0xff]
    %v375 = vld [vmem:[%s1 + $0xa38] sm:$0xff]
    %v376 = vld [vmem:[%s1 + $0xa40] sm:$0xff]
    %v377 = vld [vmem:[%s1 + $0xa48] sm:$0xff]
    %v378 = vld [vmem:[%s1 + $0xa50] sm:$0xff]
    %v379 = vld [vmem:[%s1 + $0xa58] sm:$0xff]
    %v380 = vld [vmem:[%s1 + $0xa60] sm:$0xff]
    %v381 = vld [vmem:[%s1 + $0xa68] sm:$0xff]
    %v382 = vld [vmem:[%s1 + $0xa70] sm:$0xff]
    %v383 = vld [vmem:[%s1 + $0xa78] sm:$0xff]
    %v384 = vld [vmem:[%s1 + $0xa80] sm:$0xff]
    %v385 = vld [vmem:[%s1 + $0xa88] sm:$0xff]
    %v386 = vld [vmem:[%s1 + $0xa90] sm:$0xff]
    %v387 = vld [vmem:[%s1 + $0xa98] sm:$0xff]
    %v388 = vld [vmem:[%s1 + $0xaa0] sm:$0xff]
    %v389 = vld [vmem:[%s1 + $0xaa8] sm:$0xff]
    %v390 = vld [vmem:[%s1 + $0xab0] sm:$0xff]
    %v391 = vld [vmem:[%s1 + $0xab8] sm:$0xff]
    %v392 = vld [vmem:[%s1 + $0xac0] sm:$0xff]
    %v393 = vld [vmem:[%s1 + $0xac8] sm:$0xff]
    %v394 = vld [vmem:[%s1 + $0xad0] sm:$0xff]
    %v395 = vld [vmem:[%s1 + $0xad8] sm:$0xff]
    %v396 = vld [vmem:[%s1 + $0xae0] sm:$0xff]
    %v397 = vld [vmem:[%s1 + $0xae8] sm:$0xff]
    %v398 = vld [vmem:[%s1 + $0xaf0] sm:$0xff]
    %v399 = vld [vmem:[%s1 + $0xaf8] sm:$0xff]
    %v400 = vld [vmem:[%s1 + $0xb00] sm:$0xff]
    %v401 = vld [vmem:[%s1 + $0xb08] sm:$0xff]
    %v402 = vld [vmem:[%s1 + $0xb10] sm:$0xff]
    %v403 = vld [vmem:[%s1 + $0xb18] sm:$0xff]
    %v404 = vld [vmem:[%s1 + $0xb20] sm:$0xff]
    %v405 = vld [vmem:[%s1 + $0xb28] sm:$0xff]
    %v406 = vld [vmem:[%s1 + $0xb30] sm:$0xff]
    %v407 = vld [vmem:[%s1 + $0xb38] sm:$0xff]
    %v408 = vld [vmem:[%s1 + $0xb40] sm:$0xff]
    %v409 = vld [vmem:[%s1 + $0xb48] sm:$0xff]
    %v410 = vld [vmem:[%s1 + $0xb50] sm:$0xff]
    %v411 = vld [vmem:[%s1 + $0xb58] sm:$0xff]
    %v412 = vld [vmem:[%s1 + $0xb60] sm:$0xff]
    %v413 = vld [vmem:[%s1 + $0xb68] sm:$0xff]
    %v414 = vld [vmem:[%s1 + $0xb70] sm:$0xff]
    %v415 = vld [vmem:[%s1 + $0xb78] sm:$0xff]
    %v416 = vld [vmem:[%s1 + $0xb80] sm:$0xff]
    %v417 = vld [vmem:[%s1 + $0xb88] sm:$0xff]
    %v418 = vld [vmem:[%s1 + $0xb90] sm:$0xff]
    %v419 = vld [vmem:[%s1 + $0xb98] sm:$0xff]
    %v420 = vld [vmem:[%s1 + $0xba0] sm:$0xff]
    %v421 = vld [vmem:[%s1 + $0xba8] sm:$0xff]
    %v422 = vld [vmem:[%s1 + $0xbb0] sm:$0xff]
    %v423 = vld [vmem:[%s1 + $0xbb8] sm:$0xff]
    %v424 = vld [vmem:[%s1 + $0xbc0] sm:$0xff]
    %v425 = vld [vmem:[%s1 + $0xbc8] sm:$0xff]
    %v426 = vld [vmem:[%s1 + $0xbd0] sm:$0xff]
    %v427 = vld [vmem:[%s1 + $0xbd8] sm:$0xff]
    %v428 = vld [vmem:[%s1 + $0xbe0] sm:$0xff]
    %v429 = vld [vmem:[%s1 + $0xbe8] sm:$0xff]
    %v430 = vld [vmem:[%s1 + $0xbf0] sm:$0xff]
    %v431 = vld [vmem:[%s1 + $0xbf8] sm:$0xff]
    %v432 = vld [vmem:[%s2] sm:$0x1]
    %v434 = vperm.slane %v432, 0
    %436 = vmatpush.msra.mxu0 %v63
    %437 = vmatpush.msra.mxu0 %v62
    %438 = vmatpush.msra.mxu0 %v61
    %439 = vmatpush.msra.mxu0 %v60
    %440 = vmatpush.msra.mxu0 %v59
    %441 = vmatpush.msra.mxu0 %v58
    %442 = vmatpush.msra.mxu0 %v57
    %443 = vmatpush.msra.mxu0 %v56
    %444 = vmatpush.msra.mxu0 %v55
    %445 = vmatpush.msra.mxu0 %v54
    %446 = vmatpush.msra.mxu0 %v53
    %447 = vmatpush.msra.mxu0 %v52
    %448 = vmatpush.msra.mxu0 %v51
    %449 = vmatpush.msra.mxu0 %v50
    %450 = vmatpush.msra.mxu0 %v49
    %451 = vmatpush.msra.mxu0 %v48
    %452 = vmatmul.f32.gmra.mxu0 %v24
    %v453 = vpop.f32.mrf.mxu0
    %v454 = vadd.f32 %v434, %v453
    %455 = vdwg.mxu0
    %456 = vmatpush.msra.mxu0 %v79
    %457 = vmatpush.msra.mxu0 %v78
    %458 = vmatpush.msra.mxu0 %v77
    %459 = vmatpush.msra.mxu0 %v76
    %460 = vmatpush.msra.mxu0 %v75
    %461 = vmatpush.msra.mxu0 %v74
    %462 = vmatpush.msra.mxu0 %v73
    %463 = vmatpush.msra.mxu0 %v72
    %464 = vmatpush.msra.mxu0 %v71
    %465 = vmatpush.msra.mxu0 %v70
    %466 = vmatpush.msra.mxu0 %v69
    %467 = vmatpush.msra.mxu0 %v68
    %468 = vmatpush.msra.mxu0 %v67
    %469 = vmatpush.msra.mxu0 %v66
    %470 = vmatpush.msra.mxu0 %v65
    %471 = vmatpush.msra.mxu0 %v64
    %472 = vmatmul.f32.gmra.mxu0 %v25
    %v473 = vpop.f32.mrf.mxu0
    %v474 = vadd.f32 %v454, %v473
    %475 = vdwg.mxu0
    %476 = vmatpush.msra.mxu0 %v95
    %477 = vmatpush.msra.mxu0 %v94
    %478 = vmatpush.msra.mxu0 %v93
    %479 = vmatpush.msra.mxu0 %v92
    %480 = vmatpush.msra.mxu0 %v91
    %481 = vmatpush.msra.mxu0 %v90
    %482 = vmatpush.msra.mxu0 %v89
    %483 = vmatpush.msra.mxu0 %v88
    %484 = vmatpush.msra.mxu0 %v87
    %485 = vmatpush.msra.mxu0 %v86
    %486 = vmatpush.msra.mxu0 %v85
    %487 = vmatpush.msra.mxu0 %v84
    %488 = vmatpush.msra.mxu0 %v83
    %489 = vmatpush.msra.mxu0 %v82
    %490 = vmatpush.msra.mxu0 %v81
    %491 = vmatpush.msra.mxu0 %v80
    %492 = vmatmul.f32.gmra.mxu0 %v26
    %v493 = vpop.f32.mrf.mxu0
    %v494 = vadd.f32 %v474, %v493
    %495 = vdwg.mxu0
    %496 = vmatpush.msra.mxu0 %v111
    %497 = vmatpush.msra.mxu0 %v110
    %498 = vmatpush.msra.mxu0 %v109
    %499 = vmatpush.msra.mxu0 %v108
    %500 = vmatpush.msra.mxu0 %v107
    %501 = vmatpush.msra.mxu0 %v106
    %502 = vmatpush.msra.mxu0 %v105
    %503 = vmatpush.msra.mxu0 %v104
    %504 = vmatpush.msra.mxu0 %v103
    %505 = vmatpush.msra.mxu0 %v102
    %506 = vmatpush.msra.mxu0 %v101
    %507 = vmatpush.msra.mxu0 %v100
    %508 = vmatpush.msra.mxu0 %v99
    %509 = vmatpush.msra.mxu0 %v98
    %510 = vmatpush.msra.mxu0 %v97
    %511 = vmatpush.msra.mxu0 %v96
    %512 = vmatmul.f32.gmra.mxu0 %v27
    %v513 = vpop.f32.mrf.mxu0
    %v514 = vadd.f32 %v494, %v513
    %515 = vdwg.mxu0
    %516 = vmatpush.msra.mxu0 %v127
    %517 = vmatpush.msra.mxu0 %v126
    %518 = vmatpush.msra.mxu0 %v125
    %519 = vmatpush.msra.mxu0 %v124
    %520 = vmatpush.msra.mxu0 %v123
    %521 = vmatpush.msra.mxu0 %v122
    %522 = vmatpush.msra.mxu0 %v121
    %523 = vmatpush.msra.mxu0 %v120
    %524 = vmatpush.msra.mxu0 %v119
    %525 = vmatpush.msra.mxu0 %v118
    %526 = vmatpush.msra.mxu0 %v117
    %527 = vmatpush.msra.mxu0 %v116
    %528 = vmatpush.msra.mxu0 %v115
    %529 = vmatpush.msra.mxu0 %v114
    %530 = vmatpush.msra.mxu0 %v113
    %531 = vmatpush.msra.mxu0 %v112
    %532 = vmatmul.f32.gmra.mxu0 %v28
    %v533 = vpop.f32.mrf.mxu0
    %v534 = vadd.f32 %v514, %v533
    %535 = vdwg.mxu0
    %536 = vmatpush.msra.mxu0 %v143
    %537 = vmatpush.msra.mxu0 %v142
    %538 = vmatpush.msra.mxu0 %v141
    %539 = vmatpush.msra.mxu0 %v140
    %540 = vmatpush.msra.mxu0 %v139
    %541 = vmatpush.msra.mxu0 %v138
    %542 = vmatpush.msra.mxu0 %v137
    %543 = vmatpush.msra.mxu0 %v136
    %544 = vmatpush.msra.mxu0 %v135
    %545 = vmatpush.msra.mxu0 %v134
    %546 = vmatpush.msra.mxu0 %v133
    %547 = vmatpush.msra.mxu0 %v132
    %548 = vmatpush.msra.mxu0 %v131
    %549 = vmatpush.msra.mxu0 %v130
    %550 = vmatpush.msra.mxu0 %v129
    %551 = vmatpush.msra.mxu0 %v128
    %552 = vmatmul.f32.gmra.mxu0 %v29
    %v553 = vpop.f32.mrf.mxu0
    %v554 = vadd.f32 %v534, %v553
    %555 = vdwg.mxu0
    %556 = vmatpush.msra.mxu0 %v159
    %557 = vmatpush.msra.mxu0 %v158
    %558 = vmatpush.msra.mxu0 %v157
    %559 = vmatpush.msra.mxu0 %v156
    %560 = vmatpush.msra.mxu0 %v155
    %561 = vmatpush.msra.mxu0 %v154
    %562 = vmatpush.msra.mxu0 %v153
    %563 = vmatpush.msra.mxu0 %v152
    %564 = vmatpush.msra.mxu0 %v151
    %565 = vmatpush.msra.mxu0 %v150
    %566 = vmatpush.msra.mxu0 %v149
    %567 = vmatpush.msra.mxu0 %v148
    %568 = vmatpush.msra.mxu0 %v147
    %569 = vmatpush.msra.mxu0 %v146
    %570 = vmatpush.msra.mxu0 %v145
    %571 = vmatpush.msra.mxu0 %v144
    %572 = vmatmul.f32.gmra.mxu0 %v30
    %v573 = vpop.f32.mrf.mxu0
    %v574 = vadd.f32 %v554, %v573
    %575 = vdwg.mxu0
    %576 = vmatpush.msra.mxu0 %v175
    %577 = vmatpush.msra.mxu0 %v174
    %578 = vmatpush.msra.mxu0 %v173
    %579 = vmatpush.msra.mxu0 %v172
    %580 = vmatpush.msra.mxu0 %v171
    %581 = vmatpush.msra.mxu0 %v170
    %582 = vmatpush.msra.mxu0 %v169
    %583 = vmatpush.msra.mxu0 %v168
    %584 = vmatpush.msra.mxu0 %v167
    %585 = vmatpush.msra.mxu0 %v166
    %586 = vmatpush.msra.mxu0 %v165
    %587 = vmatpush.msra.mxu0 %v164
    %588 = vmatpush.msra.mxu0 %v163
    %589 = vmatpush.msra.mxu0 %v162
    %590 = vmatpush.msra.mxu0 %v161
    %591 = vmatpush.msra.mxu0 %v160
    %592 = vmatmul.f32.gmra.mxu0 %v31
    %v593 = vpop.f32.mrf.mxu0
    %v594 = vadd.f32 %v574, %v593
    %595 = vdwg.mxu0
    %596 = vmatpush.msra.mxu0 %v191
    %597 = vmatpush.msra.mxu0 %v190
    %598 = vmatpush.msra.mxu0 %v189
    %599 = vmatpush.msra.mxu0 %v188
    %600 = vmatpush.msra.mxu0 %v187
    %601 = vmatpush.msra.mxu0 %v186
    %602 = vmatpush.msra.mxu0 %v185
    %603 = vmatpush.msra.mxu0 %v184
    %604 = vmatpush.msra.mxu0 %v183
    %605 = vmatpush.msra.mxu0 %v182
    %606 = vmatpush.msra.mxu0 %v181
    %607 = vmatpush.msra.mxu0 %v180
    %608 = vmatpush.msra.mxu0 %v179
    %609 = vmatpush.msra.mxu0 %v178
    %610 = vmatpush.msra.mxu0 %v177
    %611 = vmatpush.msra.mxu0 %v176
    %612 = vmatmul.f32.gmra.mxu0 %v32
    %v613 = vpop.f32.mrf.mxu0
    %v614 = vadd.f32 %v594, %v613
    %615 = vdwg.mxu0
    %616 = vmatpush.msra.mxu0 %v207
    %617 = vmatpush.msra.mxu0 %v206
    %618 = vmatpush.msra.mxu0 %v205
    %619 = vmatpush.msra.mxu0 %v204
    %620 = vmatpush.msra.mxu0 %v203
    %621 = vmatpush.msra.mxu0 %v202
    %622 = vmatpush.msra.mxu0 %v201
    %623 = vmatpush.msra.mxu0 %v200
    %624 = vmatpush.msra.mxu0 %v199
    %625 = vmatpush.msra.mxu0 %v198
    %626 = vmatpush.msra.mxu0 %v197
    %627 = vmatpush.msra.mxu0 %v196
    %628 = vmatpush.msra.mxu0 %v195
    %629 = vmatpush.msra.mxu0 %v194
    %630 = vmatpush.msra.mxu0 %v193
    %631 = vmatpush.msra.mxu0 %v192
    %632 = vmatmul.f32.gmra.mxu0 %v33
    %v633 = vpop.f32.mrf.mxu0
    %v634 = vadd.f32 %v614, %v633
    %635 = vdwg.mxu0
    %636 = vmatpush.msra.mxu0 %v223
    %637 = vmatpush.msra.mxu0 %v222
    %638 = vmatpush.msra.mxu0 %v221
    %639 = vmatpush.msra.mxu0 %v220
    %640 = vmatpush.msra.mxu0 %v219
    %641 = vmatpush.msra.mxu0 %v218
    %642 = vmatpush.msra.mxu0 %v217
    %643 = vmatpush.msra.mxu0 %v216
    %644 = vmatpush.msra.mxu0 %v215
    %645 = vmatpush.msra.mxu0 %v214
    %646 = vmatpush.msra.mxu0 %v213
    %647 = vmatpush.msra.mxu0 %v212
    %648 = vmatpush.msra.mxu0 %v211
    %649 = vmatpush.msra.mxu0 %v210
    %650 = vmatpush.msra.mxu0 %v209
    %651 = vmatpush.msra.mxu0 %v208
    %652 = vmatmul.f32.gmra.mxu0 %v34
    %v653 = vpop.f32.mrf.mxu0
    %v654 = vadd.f32 %v634, %v653
    %655 = vdwg.mxu0
    %656 = vmatpush.msra.mxu0 %v239
    %657 = vmatpush.msra.mxu0 %v238
    %658 = vmatpush.msra.mxu0 %v237
    %659 = vmatpush.msra.mxu0 %v236
    %660 = vmatpush.msra.mxu0 %v235
    %661 = vmatpush.msra.mxu0 %v234
    %662 = vmatpush.msra.mxu0 %v233
    %663 = vmatpush.msra.mxu0 %v232
    %664 = vmatpush.msra.mxu0 %v231
    %665 = vmatpush.msra.mxu0 %v230
    %666 = vmatpush.msra.mxu0 %v229
    %667 = vmatpush.msra.mxu0 %v228
    %668 = vmatpush.msra.mxu0 %v227
    %669 = vmatpush.msra.mxu0 %v226
    %670 = vmatpush.msra.mxu0 %v225
    %671 = vmatpush.msra.mxu0 %v224
    %672 = vmatmul.f32.gmra.mxu0 %v35
    %v673 = vpop.f32.mrf.mxu0
    %v674 = vadd.f32 %v654, %v673
    %675 = vdwg.mxu0
    %676 = vmatpush.msra.mxu0 %v255
    %677 = vmatpush.msra.mxu0 %v254
    %678 = vmatpush.msra.mxu0 %v253
    %679 = vmatpush.msra.mxu0 %v252
    %680 = vmatpush.msra.mxu0 %v251
    %681 = vmatpush.msra.mxu0 %v250
    %682 = vmatpush.msra.mxu0 %v249
    %683 = vmatpush.msra.mxu0 %v248
    %684 = vmatpush.msra.mxu0 %v247
    %685 = vmatpush.msra.mxu0 %v246
    %686 = vmatpush.msra.mxu0 %v245
    %687 = vmatpush.msra.mxu0 %v244
    %688 = vmatpush.msra.mxu0 %v243
    %689 = vmatpush.msra.mxu0 %v242
    %690 = vmatpush.msra.mxu0 %v241
    %691 = vmatpush.msra.mxu0 %v240
    %692 = vmatmul.f32.gmra.mxu0 %v36
    %v693 = vpop.f32.mrf.mxu0
    %v694 = vadd.f32 %v674, %v693
    %695 = vdwg.mxu0
    %696 = vmatpush.msra.mxu0 %v271
    %697 = vmatpush.msra.mxu0 %v270
    %698 = vmatpush.msra.mxu0 %v269
    %699 = vmatpush.msra.mxu0 %v268
    %700 = vmatpush.msra.mxu0 %v267
    %701 = vmatpush.msra.mxu0 %v266
    %702 = vmatpush.msra.mxu0 %v265
    %703 = vmatpush.msra.mxu0 %v264
    %704 = vmatpush.msra.mxu0 %v263
    %705 = vmatpush.msra.mxu0 %v262
    %706 = vmatpush.msra.mxu0 %v261
    %707 = vmatpush.msra.mxu0 %v260
    %708 = vmatpush.msra.mxu0 %v259
    %709 = vmatpush.msra.mxu0 %v258
    %710 = vmatpush.msra.mxu0 %v257
    %711 = vmatpush.msra.mxu0 %v256
    %712 = vmatmul.f32.gmra.mxu0 %v37
    %v713 = vpop.f32.mrf.mxu0
    %v714 = vadd.f32 %v694, %v713
    %715 = vdwg.mxu0
    %716 = vmatpush.msra.mxu0 %v287
    %717 = vmatpush.msra.mxu0 %v286
    %718 = vmatpush.msra.mxu0 %v285
    %719 = vmatpush.msra.mxu0 %v284
    %720 = vmatpush.msra.mxu0 %v283
    %721 = vmatpush.msra.mxu0 %v282
    %722 = vmatpush.msra.mxu0 %v281
    %723 = vmatpush.msra.mxu0 %v280
    %724 = vmatpush.msra.mxu0 %v279
    %725 = vmatpush.msra.mxu0 %v278
    %726 = vmatpush.msra.mxu0 %v277
    %727 = vmatpush.msra.mxu0 %v276
    %728 = vmatpush.msra.mxu0 %v275
    %729 = vmatpush.msra.mxu0 %v274
    %730 = vmatpush.msra.mxu0 %v273
    %731 = vmatpush.msra.mxu0 %v272
    %732 = vmatmul.f32.gmra.mxu0 %v38
    %v733 = vpop.f32.mrf.mxu0
    %v734 = vadd.f32 %v714, %v733
    %735 = vdwg.mxu0
    %736 = vmatpush.msra.mxu0 %v303
    %737 = vmatpush.msra.mxu0 %v302
    %738 = vmatpush.msra.mxu0 %v301
    %739 = vmatpush.msra.mxu0 %v300
    %740 = vmatpush.msra.mxu0 %v299
    %741 = vmatpush.msra.mxu0 %v298
    %742 = vmatpush.msra.mxu0 %v297
    %743 = vmatpush.msra.mxu0 %v296
    %744 = vmatpush.msra.mxu0 %v295
    %745 = vmatpush.msra.mxu0 %v294
    %746 = vmatpush.msra.mxu0 %v293
    %747 = vmatpush.msra.mxu0 %v292
    %748 = vmatpush.msra.mxu0 %v291
    %749 = vmatpush.msra.mxu0 %v290
    %750 = vmatpush.msra.mxu0 %v289
    %751 = vmatpush.msra.mxu0 %v288
    %752 = vmatmul.f32.gmra.mxu0 %v39
    %v753 = vpop.f32.mrf.mxu0
    %v754 = vadd.f32 %v734, %v753
    %755 = vdwg.mxu0
    %756 = vmatpush.msra.mxu0 %v319
    %757 = vmatpush.msra.mxu0 %v318
    %758 = vmatpush.msra.mxu0 %v317
    %759 = vmatpush.msra.mxu0 %v316
    %760 = vmatpush.msra.mxu0 %v315
    %761 = vmatpush.msra.mxu0 %v314
    %762 = vmatpush.msra.mxu0 %v313
    %763 = vmatpush.msra.mxu0 %v312
    %764 = vmatpush.msra.mxu0 %v311
    %765 = vmatpush.msra.mxu0 %v310
    %766 = vmatpush.msra.mxu0 %v309
    %767 = vmatpush.msra.mxu0 %v308
    %768 = vmatpush.msra.mxu0 %v307
    %769 = vmatpush.msra.mxu0 %v306
    %770 = vmatpush.msra.mxu0 %v305
    %771 = vmatpush.msra.mxu0 %v304
    %772 = vmatmul.f32.gmra.mxu0 %v40
    %v773 = vpop.f32.mrf.mxu0
    %v774 = vadd.f32 %v754, %v773
    %775 = vdwg.mxu0
    %776 = vmatpush.msra.mxu0 %v335
    %777 = vmatpush.msra.mxu0 %v334
    %778 = vmatpush.msra.mxu0 %v333
    %779 = vmatpush.msra.mxu0 %v332
    %780 = vmatpush.msra.mxu0 %v331
    %781 = vmatpush.msra.mxu0 %v330
    %782 = vmatpush.msra.mxu0 %v329
    %783 = vmatpush.msra.mxu0 %v328
    %784 = vmatpush.msra.mxu0 %v327
    %785 = vmatpush.msra.mxu0 %v326
    %786 = vmatpush.msra.mxu0 %v325
    %787 = vmatpush.msra.mxu0 %v324
    %788 = vmatpush.msra.mxu0 %v323
    %789 = vmatpush.msra.mxu0 %v322
    %790 = vmatpush.msra.mxu0 %v321
    %791 = vmatpush.msra.mxu0 %v320
    %792 = vmatmul.f32.gmra.mxu0 %v41
    %v793 = vpop.f32.mrf.mxu0
    %v794 = vadd.f32 %v774, %v793
    %795 = vdwg.mxu0
    %796 = vmatpush.msra.mxu0 %v351
    %797 = vmatpush.msra.mxu0 %v350
    %798 = vmatpush.msra.mxu0 %v349
    %799 = vmatpush.msra.mxu0 %v348
    %800 = vmatpush.msra.mxu0 %v347
    %801 = vmatpush.msra.mxu0 %v346
    %802 = vmatpush.msra.mxu0 %v345
    %803 = vmatpush.msra.mxu0 %v344
    %804 = vmatpush.msra.mxu0 %v343
    %805 = vmatpush.msra.mxu0 %v342
    %806 = vmatpush.msra.mxu0 %v341
    %807 = vmatpush.msra.mxu0 %v340
    %808 = vmatpush.msra.mxu0 %v339
    %809 = vmatpush.msra.mxu0 %v338
    %810 = vmatpush.msra.mxu0 %v337
    %811 = vmatpush.msra.mxu0 %v336
    %812 = vmatmul.f32.gmra.mxu0 %v42
    %v813 = vpop.f32.mrf.mxu0
    %v814 = vadd.f32 %v794, %v813
    %815 = vdwg.mxu0
    %816 = vmatpush.msra.mxu0 %v367
    %817 = vmatpush.msra.mxu0 %v366
    %818 = vmatpush.msra.mxu0 %v365
    %819 = vmatpush.msra.mxu0 %v364
    %820 = vmatpush.msra.mxu0 %v363
    %821 = vmatpush.msra.mxu0 %v362
    %822 = vmatpush.msra.mxu0 %v361
    %823 = vmatpush.msra.mxu0 %v360
    %824 = vmatpush.msra.mxu0 %v359
    %825 = vmatpush.msra.mxu0 %v358
    %826 = vmatpush.msra.mxu0 %v357
    %827 = vmatpush.msra.mxu0 %v356
    %828 = vmatpush.msra.mxu0 %v355
    %829 = vmatpush.msra.mxu0 %v354
    %830 = vmatpush.msra.mxu0 %v353
    %831 = vmatpush.msra.mxu0 %v352
    %832 = vmatmul.f32.gmra.mxu0 %v43
    %v833 = vpop.f32.mrf.mxu0
    %v834 = vadd.f32 %v814, %v833
    %835 = vdwg.mxu0
    %836 = vmatpush.msra.mxu0 %v383
    %837 = vmatpush.msra.mxu0 %v382
    %838 = vmatpush.msra.mxu0 %v381
    %839 = vmatpush.msra.mxu0 %v380
    %840 = vmatpush.msra.mxu0 %v379
    %841 = vmatpush.msra.mxu0 %v378
    %842 = vmatpush.msra.mxu0 %v377
    %843 = vmatpush.msra.mxu0 %v376
    %844 = vmatpush.msra.mxu0 %v375
    %845 = vmatpush.msra.mxu0 %v374
    %846 = vmatpush.msra.mxu0 %v373
    %847 = vmatpush.msra.mxu0 %v372
    %848 = vmatpush.msra.mxu0 %v371
    %849 = vmatpush.msra.mxu0 %v370
    %850 = vmatpush.msra.mxu0 %v369
    %851 = vmatpush.msra.mxu0 %v368
    %852 = vmatmul.f32.gmra.mxu0 %v44
    %v853 = vpop.f32.mrf.mxu0
    %v854 = vadd.f32 %v834, %v853
    %855 = vdwg.mxu0
    %856 = vmatpush.msra.mxu0 %v399
    %857 = vmatpush.msra.mxu0 %v398
    %858 = vmatpush.msra.mxu0 %v397
    %859 = vmatpush.msra.mxu0 %v396
    %860 = vmatpush.msra.mxu0 %v395
    %861 = vmatpush.msra.mxu0 %v394
    %862 = vmatpush.msra.mxu0 %v393
    %863 = vmatpush.msra.mxu0 %v392
    %864 = vmatpush.msra.mxu0 %v391
    %865 = vmatpush.msra.mxu0 %v390
    %866 = vmatpush.msra.mxu0 %v389
    %867 = vmatpush.msra.mxu0 %v388
    %868 = vmatpush.msra.mxu0 %v387
    %869 = vmatpush.msra.mxu0 %v386
    %870 = vmatpush.msra.mxu0 %v385
    %871 = vmatpush.msra.mxu0 %v384
    %872 = vmatmul.f32.gmra.mxu0 %v45
    %v873 = vpop.f32.mrf.mxu0
    %v874 = vadd.f32 %v854, %v873
    %875 = vdwg.mxu0
    %876 = vmatpush.msra.mxu0 %v415
    %877 = vmatpush.msra.mxu0 %v414
    %878 = vmatpush.msra.mxu0 %v413
    %879 = vmatpush.msra.mxu0 %v412
    %880 = vmatpush.msra.mxu0 %v411
    %881 = vmatpush.msra.mxu0 %v410
    %882 = vmatpush.msra.mxu0 %v409
    %883 = vmatpush.msra.mxu0 %v408
    %884 = vmatpush.msra.mxu0 %v407
    %885 = vmatpush.msra.mxu0 %v406
    %886 = vmatpush.msra.mxu0 %v405
    %887 = vmatpush.msra.mxu0 %v404
    %888 = vmatpush.msra.mxu0 %v403
    %889 = vmatpush.msra.mxu0 %v402
    %890 = vmatpush.msra.mxu0 %v401
    %891 = vmatpush.msra.mxu0 %v400
    %892 = vmatmul.f32.gmra.mxu0 %v46
    %v893 = vpop.f32.mrf.mxu0
    %v894 = vadd.f32 %v874, %v893
    %895 = vdwg.mxu0
    %896 = vmatpush.msra.mxu0 %v431
    %897 = vmatpush.msra.mxu0 %v430
    %898 = vmatpush.msra.mxu0 %v429
    %899 = vmatpush.msra.mxu0 %v428
    %900 = vmatpush.msra.mxu0 %v427
    %901 = vmatpush.msra.mxu0 %v426
    %902 = vmatpush.msra.mxu0 %v425
    %903 = vmatpush.msra.mxu0 %v424
    %904 = vmatpush.msra.mxu0 %v423
    %905 = vmatpush.msra.mxu0 %v422
    %906 = vmatpush.msra.mxu0 %v421
    %907 = vmatpush.msra.mxu0 %v420
    %908 = vmatpush.msra.mxu0 %v419
    %909 = vmatpush.msra.mxu0 %v418
    %910 = vmatpush.msra.mxu0 %v417
    %911 = vmatpush.msra.mxu0 %v416
    %912 = vmatmul.f32.gmra.mxu0 %v47
    %v913 = vpop.f32.mrf.mxu0
    %v914 = vadd.f32 %v894, %v913
    %915 = vdwg.mxu0
    %v916 = vmax.f32 %v914, 0.0
    %v917 = vld [vmem:[%s3] sm:$0xff]
    %v918 = vld [vmem:[%s3 + $0x8] sm:$0xff]
    %v919 = vld [vmem:[%s3 + $0x10] sm:$0xff]
    %v920 = vld [vmem:[%s3 + $0x18] sm:$0xff]
    %vm921 = vcmask 261120
    %v923 = vsel %vm921, %v916, 0
    %925 = vmatpush.msra.mxu0 0.0
    %926 = vmatpush.msra.mxu0 0.0
    %927 = vmatpush.msra.mxu0 0.0
    %928 = vmatpush.msra.mxu0 0.0
    %929 = vmatpush.msra.mxu0 0.0
    %930 = vmatpush.msra.mxu0 0.0
    %931 = vmatpush.msra.mxu0 0.0
    %932 = vmatpush.msra.mxu0 0.0
    %933 = vmatpush.msra.mxu0 0.0
    %934 = vmatpush.msra.mxu0 0.0
    %935 = vmatpush.msra.mxu0 0.0
    %936 = vmatpush.msra.mxu0 0.0
    %937 = vmatpush.msra.mxu0 %v920
    %938 = vmatpush.msra.mxu0 %v919
    %939 = vmatpush.msra.mxu0 %v918
    %940 = vmatpush.msra.mxu0 %v917
    %941 = vmatmul.f32.gmra.mxu0 %v923
    %v942 = vpop.f32.mrf.mxu0
    %v943 = vadd.f32 0.0, %v942
    %944 = vdwg.mxu0
    %v945 = vmax.f32 %v943, 0.0
    %v946 = vld [vmem:[%s4] sm:$0xff]
    %v947 = vld [vmem:[%s4 + $0x8] sm:$0xff]
    %v948 = vld [vmem:[%s4 + $0x10] sm:$0xff]
    %v949 = vld [vmem:[%s4 + $0x18] sm:$0xff]
    %v950 = vld [vmem:[%s4 + $0x20] sm:$0xff]
    %v951 = vld [vmem:[%s4 + $0x28] sm:$0xff]
    %v952 = vld [vmem:[%s4 + $0x30] sm:$0xff]
    %v953 = vld [vmem:[%s4 + $0x38] sm:$0xff]
    %v954 = vld [vmem:[%s5] sm:$0x1]
    %v956 = vperm.slane %v954, 0
    %vm958 = vcmask 523264
    %v960 = vsel %vm958, %v945, 0
    %962 = vmatpush.msra.mxu0 0.0
    %963 = vmatpush.msra.mxu0 0.0
    %964 = vmatpush.msra.mxu0 0.0
    %965 = vmatpush.msra.mxu0 0.0
    %966 = vmatpush.msra.mxu0 0.0
    %967 = vmatpush.msra.mxu0 0.0
    %968 = vmatpush.msra.mxu0 0.0
    %969 = vmatpush.msra.mxu0 0.0
    %970 = vmatpush.msra.mxu0 %v953
    %971 = vmatpush.msra.mxu0 %v952
    %972 = vmatpush.msra.mxu0 %v951
    %973 = vmatpush.msra.mxu0 %v950
    %974 = vmatpush.msra.mxu0 %v949
    %975 = vmatpush.msra.mxu0 %v948
    %976 = vmatpush.msra.mxu0 %v947
    %977 = vmatpush.msra.mxu0 %v946
    %978 = vmatmul.f32.gmra.mxu0 %v960
    %v979 = vpop.f32.mrf.mxu0
    %v980 = vadd.f32 %v956, %v979
    %981 = vdwg.mxu0
    %vm982 = vcmask 80896
    %983 = vst.msk [vmem:[#allocation2] sm:$0xff] %vm982, %v980
    // Predicated region
    $region26: #{mlp2_forward.1} parent=1 // pred_check
      _
    $region27: #{mlp2_forward.1} parent=1 // pred_check_branch
      %985 = sbr.rel (0) target = $region29
    $region28: #{mlp2_forward.1} parent=1 // pred_region
      %987 = vsyncadd [#allocation3], 0
      %s989 = sshll.u32 [#allocation2], 4
      %s990 = int_to_ptr.vmem [resolvable:$true] %s989
      %s991 = sshll.u32 %s6, 4
      %s992 = int_to_ptr.hbm [resolvable:$true] %s991
      %994 = dma.vmem_to_hbm [thread:$0]  %s990, 128, %s992, [#allocation3]
    $region29: #{mlp2_forward.1} parent=1 // pred_fallthru
      _
    // Predicated region
    $region30: #{mlp2_forward.1} parent=1 // pred_check
      _
    $region31: #{mlp2_forward.1} parent=1 // pred_check_branch
      %996 = sbr.rel (0) target = $region33
    $region32: #{mlp2_forward.1} parent=1 // pred_region
      %998 = dma.done [#allocation3], 128
    $region33: #{mlp2_forward.1} parent=1 // pred_fallthru
      _
    %999 = vsyncpa [#allocation3], 1

</llo_original>
